<compile_context>
chip_gen: v7x
topology: tpu7x:2x2x1
jax: 0.10.0
libtpu: 0.0.40
codegen_flags: <defaults>
</compile_context>

<pallas_src>
import jax
import jax.numpy as jnp
from jax.experimental import pallas as pl
from jax.experimental.pallas import tpu as pltpu

NCLASSES = 500
HIDDEN = 512
NCLASSES_PAD = 512  # pad 500 -> 512 for lane-dense (unmasked) vector stores


def _round_up(n, m):
    return ((n + m - 1) // m) * m


def mlp_kernel(x_ref, w1_ref, b1_ref, w2_ref, b2_ref, o_ref):
    # fc1: x @ W1 + b1  (x already bf16 from HBM, bf16 MXU inputs, f32 accum)
    h = jnp.dot(x_ref[...], w1_ref[...], preferred_element_type=jnp.float32)
    h = jnp.maximum(h + b1_ref[...], 0.0)          # ReLU
    # Dropout(p=0.5): identity in inference mode.
    # TODO(synk): training-mode dropout would use pltpu.prng_seed + prng_random_bits.
    # fc2: h @ W2 + b2
    out = jnp.dot(h.astype(jnp.bfloat16), w2_ref[...],
                  preferred_element_type=jnp.float32)
    o_ref[...] = (out + b2_ref[...]).astype(o_ref.dtype)


def prepare_params(w1, b1, w2, b2):
    """One-time packing (do at init, NOT per forward call):
    bf16 weights, fc2 weight/bias zero-padded to 512 lanes, 2-D biases."""
    w1_p = w1.astype(jnp.bfloat16)                                   # [F, 512]
    b1_p = b1.reshape(1, HIDDEN).astype(jnp.float32)                 # [1, 512]
    w2_p = (jnp.zeros((HIDDEN, NCLASSES_PAD), jnp.bfloat16)
            .at[:, :NCLASSES].set(w2.astype(jnp.bfloat16)))          # [512, 512]
    b2_p = (jnp.zeros((1, NCLASSES_PAD), jnp.float32)
            .at[:, :NCLASSES].set(b2.astype(jnp.float32)))           # [1, 512]
    return w1_p, b1_p, w2_p, b2_p


def sketch_classifier_forward(x, params, *, tb=512, out_dtype=jnp.float32):
    """x: [B, F] float32 (pooled features), params from prepare_params().
    Returns a lane-dense [B, NCLASSES_PAD] slab (dtype=out_dtype); columns
    [NCLASSES:] are exactly zero (slice/mask BEFORE any downstream reduction)."""
    w1_p, b1_p, w2_p, b2_p = params
    B, F = x.shape

    # Stream x as bf16: cast once here (wrapper / HBM side), not in the kernel.
    x = x.astype(jnp.bfloat16)

    # Tile selection:
    #  * equalize tiles so batch padding is < 8 rows per tile
    #  * force >= 2 grid steps (when batch allows) so "parallel" shards across
    #    v7x's two TensorCores; no-op on single-TC v5e/v6e.
    num_tiles = pl.cdiv(B, tb)
    if num_tiles < 2 and B > 8:
        num_tiles = 2
    TB = _round_up(pl.cdiv(B, num_tiles), 8)
    B_pad = num_tiles * TB
    if B_pad != B:
        x = jnp.pad(x, ((0, B_pad - B), (0, 0)))

    out_bytes = jnp.dtype(out_dtype).itemsize
    cost = pl.CostEstimate(
        flops=2 * B_pad * (F * HIDDEN + HIDDEN * NCLASSES_PAD),
        transcendentals=0,
        bytes_accessed=(B_pad * F * 2                     # x (bf16)
                        + F * HIDDEN * 2                  # W1 (bf16)
                        + HIDDEN * NCLASSES_PAD * 2       # W2 (bf16)
                        + (HIDDEN + NCLASSES_PAD) * 4     # biases (f32)
                        + B_pad * NCLASSES_PAD * out_bytes))  # out

    out_pad = pl.pallas_call(
        mlp_kernel,
        out_shape=jax.ShapeDtypeStruct((B_pad, NCLASSES_PAD), out_dtype),
        grid_spec=pltpu.PrefetchScalarGridSpec(
            num_scalar_prefetch=0,
            grid=(num_tiles,),
            in_specs=[
                pl.BlockSpec((TB, F), lambda i: (i, 0)),                # x tile (pipelined)
                pl.BlockSpec((F, HIDDEN), lambda i: (0, 0)),            # W1 (resident)
                pl.BlockSpec((1, HIDDEN), lambda i: (0, 0)),            # b1 (resident)
                pl.BlockSpec((HIDDEN, NCLASSES_PAD), lambda i: (0, 0)), # W2 (resident)
                pl.BlockSpec((1, NCLASSES_PAD), lambda i: (0, 0)),      # b2 (resident)
            ],
            out_specs=pl.BlockSpec((TB, NCLASSES_PAD), lambda i: (i, 0)),
        ),
        compiler_params=pltpu.CompilerParams(
            dimension_semantics=("parallel",)),
        cost_estimate=cost,
    )(x, w1_p, b1_p, w2_p, b2_p)

    if B_pad != B:
        out_pad = out_pad[:B]
    return out_pad


def init_params(feature_dim, key):
    """Deterministic PyTorch-Linear-style init (uniform +/- 1/sqrt(fan_in)).
    Weights stored (in, out) so both matmuls are plain row-major MXU dots."""
    k1, k2, k3, k4 = jax.random.split(key, 4)
    bound1 = 1.0 / (feature_dim ** 0.5)
    bound2 = 1.0 / (HIDDEN ** 0.5)
    w1 = jax.random.uniform(k1, (feature_dim, HIDDEN), jnp.float32, -bound1, bound1)
    b1 = jax.random.uniform(k2, (HIDDEN,), jnp.float32, -bound1, bound1)
    w2 = jax.random.uniform(k3, (HIDDEN, NCLASSES), jnp.float32, -bound2, bound2)
    b2 = jax.random.uniform(k4, (NCLASSES,), jnp.float32, -bound2, bound2)
    return w1, b1, w2, b2


def _reference(x, w1, b1, w2, b2):
    """Plain-JAX reference emulating the kernel's bf16-input / f32-accum matmuls."""
    xb = x.astype(jnp.bfloat16).astype(jnp.float32)
    w1f = w1.astype(jnp.bfloat16).astype(jnp.float32)
    w2f = w2.astype(jnp.bfloat16).astype(jnp.float32)
    h = jnp.maximum(xb @ w1f + b1, 0.0)
    hb = h.astype(jnp.bfloat16).astype(jnp.float32)
    return hb @ w2f + b2


if __name__ == "__main__":
    key = jax.random.PRNGKey(0)
    kx, kp, kx2 = jax.random.split(key, 3)

    # Small-shape test (B=2, F=32); batch is padded to 8 rows internally.
    B, FEATURE_DIM = 2, 32
    x = jax.random.normal(kx, (B, FEATURE_DIM), jnp.float32)
    w1, b1, w2, b2 = init_params(FEATURE_DIM, kp)
    params = prepare_params(w1, b1, w2, b2)   # hoisted out of the hot path

    out_pad = jax.block_until_ready(sketch_classifier_forward(x, params))
    out = out_pad[:, :NCLASSES]               # slice only for the check, off hot path
    ref = _reference(x, w1, b1, w2, b2)
    assert out.shape == (B, NCLASSES)
    assert jnp.allclose(out, ref, atol=1e-3, rtol=1e-3)
    assert jnp.all(out_pad[:, NCLASSES:] == 0.0)

    # Second test: multiple batch tiles (pipelined grid + equalized-tile padding).
    B2 = 20
    x2 = jax.random.normal(kx2, (B2, FEATURE_DIM), jnp.float32)
    out2 = jax.block_until_ready(sketch_classifier_forward(x2, params, tb=8))
    ref2 = _reference(x2, w1, b1, w2, b2)
    assert out2.shape == (B2, NCLASSES_PAD)
    assert jnp.allclose(out2[:, :NCLASSES], ref2, atol=1e-3, rtol=1e-3)

    # Third test: bf16 output slab (optional lower-traffic writeback path).
    out3 = jax.block_until_ready(
        sketch_classifier_forward(x2, params, tb=8, out_dtype=jnp.bfloat16))
    assert out3.dtype == jnp.bfloat16
    assert jnp.allclose(out3[:, :NCLASSES].astype(jnp.float32), ref2,
                        atol=5e-2, rtol=5e-2)

    print("KERNEL_OK")
</pallas_src>

<mosaic_0001>
module attributes {stable_mosaic.version = 11 : i64} {
  func.func @mlp_kernel(%arg0: i32, %arg1: memref<8x32xbf16, #tpu.memory_space<vmem>>, %arg2: memref<32x512xbf16, #tpu.memory_space<vmem>>, %arg3: memref<1x512xf32, #tpu.memory_space<vmem>>, %arg4: memref<512x512xbf16, #tpu.memory_space<vmem>>, %arg5: memref<1x512xf32, #tpu.memory_space<vmem>>, %arg6: memref<8x512xf32, #tpu.memory_space<vmem>>) attributes {dimension_semantics = [#tpu.dimension_semantics<parallel>], iteration_bounds = array<i64: 1>, scalar_prefetch = 0 : i64, scratch_operands = 0 : i64, tpu.core_type = #tpu.core_type<tc>, window_params = [{transform_indices = @transform_0, window_bounds = array<i64: 8, 32>}, {pipeline_mode = #tpu.pipeline_mode<synchronous>, transform_indices = @transform_1, window_bounds = array<i64: 32, 512>}, {pipeline_mode = #tpu.pipeline_mode<synchronous>, transform_indices = @transform_2, window_bounds = array<i64: 1, 512>}, {pipeline_mode = #tpu.pipeline_mode<synchronous>, transform_indices = @transform_3, window_bounds = array<i64: 512, 512>}, {pipeline_mode = #tpu.pipeline_mode<synchronous>, transform_indices = @transform_4, window_bounds = array<i64: 1, 512>}, {transform_indices = @transform_5, window_bounds = array<i64: 8, 512>}]} {
    %c0 = arith.constant 0 : index
    %c0_0 = arith.constant 0 : index
    %0 = vector.load %arg1[%c0, %c0_0] : memref<8x32xbf16, #tpu.memory_space<vmem>>, vector<8x32xbf16>
    %c0_1 = arith.constant 0 : index
    %c0_2 = arith.constant 0 : index
    %1 = vector.load %arg2[%c0_1, %c0_2] : memref<32x512xbf16, #tpu.memory_space<vmem>>, vector<32x512xbf16>
    %cst = arith.constant dense<0.000000e+00> : vector<8x512xf32>
    %2 = tpu.matmul %0, %1, %cst {dimension_numbers = #tpu.dot_dimension_numbers<[1], [0], [0], [1], [0, 0, 1, 1], [], []>} : vector<8x32xbf16>, vector<32x512xbf16>, vector<8x512xf32> -> vector<8x512xf32>
    %c0_3 = arith.constant 0 : index
    %c0_4 = arith.constant 0 : index
    %3 = vector.load %arg3[%c0_3, %c0_4] : memref<1x512xf32, #tpu.memory_space<vmem>>, vector<1x512xf32>
    %4 = vector.broadcast %3 : vector<1x512xf32> to vector<8x512xf32>
    %5 = arith.addf %2, %4 : vector<8x512xf32>
    %cst_5 = arith.constant 0.000000e+00 : f32
    %6 = vector.broadcast %cst_5 : f32 to vector<8x512xf32>
    %7 = arith.maximumf %5, %6 : vector<8x512xf32>
    %8 = arith.truncf %7 : vector<8x512xf32> to vector<8x512xbf16>
    %c0_6 = arith.constant 0 : index
    %c0_7 = arith.constant 0 : index
    %9 = vector.load %arg4[%c0_6, %c0_7] : memref<512x512xbf16, #tpu.memory_space<vmem>>, vector<512x512xbf16>
    %cst_8 = arith.constant dense<0.000000e+00> : vector<8x512xf32>
    %10 = tpu.matmul %8, %9, %cst_8 {dimension_numbers = #tpu.dot_dimension_numbers<[1], [0], [0], [1], [0, 0, 1, 1], [], []>} : vector<8x512xbf16>, vector<512x512xbf16>, vector<8x512xf32> -> vector<8x512xf32>
    %c0_9 = arith.constant 0 : index
    %c0_10 = arith.constant 0 : index
    %11 = vector.load %arg5[%c0_9, %c0_10] : memref<1x512xf32, #tpu.memory_space<vmem>>, vector<1x512xf32>
    %12 = vector.broadcast %11 : vector<1x512xf32> to vector<8x512xf32>
    %13 = arith.addf %10, %12 : vector<8x512xf32>
    %c0_11 = arith.constant 0 : index
    %c0_12 = arith.constant 0 : index
    %14 = vector.load %arg6[%c0_11, %c0_12] : memref<8x512xf32, #tpu.memory_space<vmem>>, vector<8x512xf32>
    tpu.vector_store %arg6[%c0_11, %c0_12], %13 {strides = array<i32>} : memref<8x512xf32, #tpu.memory_space<vmem>>, vector<8x512xf32>,
    return
  }
  func.func @transform_0(%arg0: i32) -> (i32, i32) {
    %c0_i32 = arith.constant 0 : i32
    %c0_i32_0 = arith.constant 0 : i32
    return %arg0, %c0_i32 : i32, i32
  }
  func.func @transform_1(%arg0: i32) -> (i32, i32) {
    %c0_i32 = arith.constant 0 : i32
    %c0_i32_0 = arith.constant 0 : i32
    %c0_i32_1 = arith.constant 0 : i32
    return %c0_i32, %c0_i32_0 : i32, i32
  }
  func.func @transform_2(%arg0: i32) -> (i32, i32) {
    %c0_i32 = arith.constant 0 : i32
    %c0_i32_0 = arith.constant 0 : i32
    %c0_i32_1 = arith.constant 0 : i32
    return %c0_i32, %c0_i32_0 : i32, i32
  }
  func.func @transform_3(%arg0: i32) -> (i32, i32) {
    %c0_i32 = arith.constant 0 : i32
    %c0_i32_0 = arith.constant 0 : i32
    %c0_i32_1 = arith.constant 0 : i32
    return %c0_i32, %c0_i32_0 : i32, i32
  }
  func.func @transform_4(%arg0: i32) -> (i32, i32) {
    %c0_i32 = arith.constant 0 : i32
    %c0_i32_0 = arith.constant 0 : i32
    %c0_i32_1 = arith.constant 0 : i32
    return %c0_i32, %c0_i32_0 : i32, i32
  }
  func.func @transform_5(%arg0: i32) -> (i32, i32) {
    %c0_i32 = arith.constant 0 : i32
    %c0_i32_0 = arith.constant 0 : i32
    return %arg0, %c0_i32 : i32, i32
  }
}

</mosaic_0001>

<llo_original>
// kernel: tpu_custom_call.1
$region0: #{tpu_custom_call.1}
  #allocation0 [shape = 'u32[]', space=smem, size = 0x4, offset = 0x4, fixed_abs, tag = 'smem constant byte address 0x4 - core index']
  #allocation1 [shape = 'u32[144,128]{1,0:T(1,128)}', space=vmem, size = 0x12000, scoped, tag = 'internal scratch']
  %s0 = inlined_call_operand.hbm [shape: bf16[8,32], index: 0, kind: input, shape index: {}]
  %s1 = inlined_call_operand.hbm [shape: bf16[32,512], index: 1, kind: input, shape index: {}]
  %s2 = inlined_call_operand.vmem [shape: f32[1,512], index: 2, kind: input, shape index: {}]
  %s3 = inlined_call_operand.hbm [shape: bf16[512,512], index: 3, kind: input, shape index: {}]
  %s4 = inlined_call_operand.vmem [shape: f32[1,512], index: 4, kind: input, shape index: {}]
  %s5 = inlined_call_operand.hbm [shape: f32[8,512], index: 5, kind: output, shape index: {}]
  %s6 = sld [smem:[#allocation0]]
  $region42: #{tpu_custom_call.1} parent=0
    _
  %s8 = ssub.s32 1, %s6
  %s9 = scalar_select 0, %s8, %s6
  $region1: #{tpu_custom_call.1} parent=0
    #allocation2 [shape = 'u8[2048]{0}', space=vmem, size = 0x800, scoped, tag = 'input window, operand 0, single buffered']
    #allocation3 [shape = 's32[1]{0}', space=sflag, size = 0x4, scoped, tag = 'scoped memory for tpu_custom_call.1']
    #allocation4 [shape = 's32[1]{0}', space=sflag, size = 0x4, scoped, tag = 'scoped memory for tpu_custom_call.1']
    #allocation5 [shape = 'u8[32768]{0}', space=vmem, size = 0x8000, scoped, tag = 'input window, operand 1, single buffered']
    #allocation6 [shape = 's32[1]{0}', space=sflag, size = 0x4, scoped, tag = 'scoped memory for tpu_custom_call.1']
    #allocation7 [shape = 'u8[524288]{0}', space=vmem, size = 0x80000, scoped, tag = 'input window, operand 3, single buffered']
    #allocation8 [shape = 'u8[16384]{0}', space=vmem, size = 0x4000, scoped, tag = 'output window, operand 0, single buffered']
    %10 = vsyncpa [#allocation3], 0
    %11 = vsyncpa [#allocation6], 0
    %12 = vsyncpa [#allocation4], 0
    // Predicated region
    $region2: #{tpu_custom_call.1} parent=1 // pred_check
      _
    $region3: #{tpu_custom_call.1} parent=1 // pred_check_branch
      %14 = sbr.rel (0) target = $region5
    $region4: #{tpu_custom_call.1} parent=1 // pred_region
      %s16 = ssub.s32 64, 64
      %17 = vsyncadd [#allocation3], %s16
      %s19 = sshll.u32 [#allocation2], 4
      %s20 = int_to_ptr.vmem [resolvable:$true] %s19
      %22 = dma.hbm_to_vmem [thread:$0]  %s0, 64, %s20, [#allocation3]
    $region5: #{tpu_custom_call.1} parent=1 // pred_fallthru
      _
    // Predicated region
    $region6: #{tpu_custom_call.1} parent=1 // pred_check
      _
    $region7: #{tpu_custom_call.1} parent=1 // pred_check_branch
      %24 = sbr.rel (0) target = $region9
    $region8: #{tpu_custom_call.1} parent=1 // pred_region
      %s26 = ssub.s32 1024, 1024
      %27 = vsyncadd [#allocation6], %s26
      %s28 = sshll.u32 [#allocation5], 4
      %s29 = int_to_ptr.vmem [resolvable:$true] %s28
      %34 = dma.hbm_to_vmem [thread:$0]  %s1, 1024, %s29, [#allocation6], 256, 256, 16
    $region9: #{tpu_custom_call.1} parent=1 // pred_fallthru
      _
    // Predicated region
    $region10: #{tpu_custom_call.1} parent=1 // pred_check
      _
    $region11: #{tpu_custom_call.1} parent=1 // pred_check_branch
      %36 = sbr.rel (0) target = $region13
    $region12: #{tpu_custom_call.1} parent=1 // pred_region
      _
    $region13: #{tpu_custom_call.1} parent=1 // pred_fallthru
      _
    // Predicated region
    $region14: #{tpu_custom_call.1} parent=1 // pred_check
      _
    $region15: #{tpu_custom_call.1} parent=1 // pred_check_branch
      %38 = sbr.rel (0) target = $region17
    $region16: #{tpu_custom_call.1} parent=1 // pred_region
      %s40 = ssub.s32 16384, 16384
      %41 = vsyncadd [#allocation6], %s40
      %s42 = sshll.u32 [#allocation7], 4
      %s43 = int_to_ptr.vmem [resolvable:$true] %s42
      %48 = dma.hbm_to_vmem [thread:$0]  %s3, 16384, %s43, [#allocation6], 256, 256, 16
    $region17: #{tpu_custom_call.1} parent=1 // pred_fallthru
      _
    // Predicated region
    $region18: #{tpu_custom_call.1} parent=1 // pred_check
      _
    $region19: #{tpu_custom_call.1} parent=1 // pred_check_branch
      %50 = sbr.rel (0) target = $region21
    $region20: #{tpu_custom_call.1} parent=1 // pred_region
      _
    $region21: #{tpu_custom_call.1} parent=1 // pred_fallthru
      _
    // Predicated region
    $region22: #{tpu_custom_call.1} parent=1 // pred_check
      _
    $region23: #{tpu_custom_call.1} parent=1 // pred_check_branch
      %52 = sbr.rel (0) target = $region25
    $region24: #{tpu_custom_call.1} parent=1 // pred_region
      %53 = dma.done [#allocation3], 64
    $region25: #{tpu_custom_call.1} parent=1 // pred_fallthru
      _
    // Predicated region
    $region26: #{tpu_custom_call.1} parent=1 // pred_check
      _
    $region27: #{tpu_custom_call.1} parent=1 // pred_check_branch
      %55 = sbr.rel (0) target = $region29
    $region28: #{tpu_custom_call.1} parent=1 // pred_region
      %56 = dma.done [#allocation6], 1024
    $region29: #{tpu_custom_call.1} parent=1 // pred_fallthru
      _
    // Predicated region
    $region30: #{tpu_custom_call.1} parent=1 // pred_check
      _
    $region31: #{tpu_custom_call.1} parent=1 // pred_check_branch
      %58 = sbr.rel (0) target = $region33
    $region32: #{tpu_custom_call.1} parent=1 // pred_region
      %59 = dma.done [#allocation6], 16384
    $region33: #{tpu_custom_call.1} parent=1 // pred_fallthru
      _
    %v61 = vld [vmem:[#allocation2] sm:$0xf]
    %v62 = vld [vmem:[#allocation5] sm:$0xff]
    %v63 = vld [vmem:[#allocation5 + $0x8] sm:$0xff]
    %v64 = vld [vmem:[#allocation5 + $0x10] sm:$0xff]
    %v65 = vld [vmem:[#allocation5 + $0x18] sm:$0xff]
    %v66 = vld [vmem:[#allocation5 + $0x20] sm:$0xff]
    %v67 = vld [vmem:[#allocation5 + $0x28] sm:$0xff]
    %v68 = vld [vmem:[#allocation5 + $0x30] sm:$0xff]
    %v69 = vld [vmem:[#allocation5 + $0x38] sm:$0xff]
    %v70 = vld [vmem:[%s2] sm:$0xf]
    %v72 = vlaneseq
    %v73 = vshrl.u32 %v72, 7
    %v74 = vsub.s32 0, %v73
    %v75 = vrot.slane %v70, %v74
    %v76 = vlaneseq
    %v77 = vshrl.u32 %v76, 7
    %v78 = vsub.s32 1, %v77
    %v79 = vrot.slane %v70, %v78
    %v80 = vlaneseq
    %v81 = vshrl.u32 %v80, 7
    %v82 = vsub.s32 2, %v81
    %v83 = vrot.slane %v70, %v82
    %v84 = vlaneseq
    %v85 = vshrl.u32 %v84, 7
    %v86 = vsub.s32 3, %v85
    %v87 = vrot.slane %v70, %v86
    %v100 = vunpack.c.l.b16 %v62
    %v101 = vunpack.c.h.b16 %v62
    %v102 = vunpack.c.l.b16 %v63
    %v103 = vunpack.c.h.b16 %v63
    %v104 = vunpack.c.l.b16 %v64
    %v105 = vunpack.c.h.b16 %v64
    %v106 = vunpack.c.l.b16 %v65
    %v107 = vunpack.c.h.b16 %v65
    %v108 = vunpack.c.l.b16 %v66
    %v109 = vunpack.c.h.b16 %v66
    %v110 = vunpack.c.l.b16 %v67
    %v111 = vunpack.c.h.b16 %v67
    %v112 = vunpack.c.l.b16 %v68
    %v113 = vunpack.c.h.b16 %v68
    %v114 = vunpack.c.l.b16 %v69
    %v115 = vunpack.c.h.b16 %v69
    %v116 = vpack.c.b16 %v104, %v100
    %v117 = vpack.c.b16 %v105, %v101
    %v118 = vpack.c.b16 %v106, %v102
    %v119 = vpack.c.b16 %v107, %v103
    %v120 = vpack.c.b16 %v112, %v108
    %v121 = vpack.c.b16 %v113, %v109
    %v122 = vpack.c.b16 %v114, %v110
    %v123 = vpack.c.b16 %v115, %v111
    %vm132 = vcmask 261120
    %v134 = vsel %vm132, %v61, 0
    %136 = vmatprep.subr.bf16.mxu0 %v117
    %137 = vmatpush1.bf16.msra.mxu0 %v116
    %138 = vmatprep.subr.bf16.mxu0 %v121
    %139 = vmatpush1.bf16.msra.mxu0 %v120
    %140 = vmatprep.subr.bf16.mxu0 0
    %141 = vmatpush1.bf16.msra.mxu0 0
    %142 = vmatprep.subr.bf16.mxu0 0
    %143 = vmatpush1.bf16.msra.mxu0 0
    %144 = vmatprep.subr.bf16.mxu0 0
    %145 = vmatpush1.bf16.msra.mxu0 0
    %146 = vmatprep.subr.bf16.mxu0 0
    %147 = vmatpush1.bf16.msra.mxu0 0
    %148 = vmatprep.subr.bf16.mxu0 0
    %149 = vmatpush1.bf16.msra.mxu0 0
    %150 = vmatprep.subr.bf16.mxu0 0
    %151 = vmatpush1.bf16.msra.mxu0 0
    %152 = vmatprep.subr.bf16.mxu0 0
    %153 = vmatpush1.bf16.msra.mxu0 0
    %154 = vmatprep.subr.bf16.mxu0 0
    %155 = vmatpush1.bf16.msra.mxu0 0
    %156 = vmatprep.subr.bf16.mxu0 0
    %157 = vmatpush1.bf16.msra.mxu0 0
    %158 = vmatprep.subr.bf16.mxu0 0
    %159 = vmatpush1.bf16.msra.mxu0 0
    %160 = vmatprep.subr.bf16.mxu0 0
    %161 = vmatpush1.bf16.msra.mxu0 0
    %162 = vmatprep.subr.bf16.mxu0 0
    %163 = vmatpush1.bf16.msra.mxu0 0
    %164 = vmatprep.subr.bf16.mxu0 0
    %165 = vmatpush1.bf16.msra.mxu0 0
    %166 = vmatprep.subr.bf16.mxu0 0
    %167 = vmatpush1.bf16.msra.mxu0 0
    %168 = vmatprep.mubr.bf16.mxu0 0
    %169 = vmatmul.mubr.bf16.gmra.mrb[0].mxu0 %v134
    %v170 = vpop.f32.mrb[0].mxu0
    %v171 = vadd.f32 %v75, %v170
    %v172 = vpop.f32.mrb[0].mxu0
    %v173 = vadd.f32 %v79, %v172
    %v174 = vpop.f32.mrb[0].mxu0
    %v175 = vpop.f32.mrb[0].mxu0
    %176 = vdwg.mxu0
    %177 = vmatprep.subr.bf16.mxu0 %v119
    %178 = vmatpush1.bf16.msra.mxu0 %v118
    %179 = vmatprep.subr.bf16.mxu0 %v123
    %180 = vmatpush1.bf16.msra.mxu0 %v122
    %181 = vmatprep.subr.bf16.mxu0 0
    %182 = vmatpush1.bf16.msra.mxu0 0
    %183 = vmatprep.subr.bf16.mxu0 0
    %184 = vmatpush1.bf16.msra.mxu0 0
    %185 = vmatprep.subr.bf16.mxu0 0
    %186 = vmatpush1.bf16.msra.mxu0 0
    %187 = vmatprep.subr.bf16.mxu0 0
    %188 = vmatpush1.bf16.msra.mxu0 0
    %189 = vmatprep.subr.bf16.mxu0 0
    %190 = vmatpush1.bf16.msra.mxu0 0
    %191 = vmatprep.subr.bf16.mxu0 0
    %192 = vmatpush1.bf16.msra.mxu0 0
    %193 = vmatprep.subr.bf16.mxu0 0
    %194 = vmatpush1.bf16.msra.mxu0 0
    %195 = vmatprep.subr.bf16.mxu0 0
    %196 = vmatpush1.bf16.msra.mxu0 0
    %197 = vmatprep.subr.bf16.mxu0 0
    %198 = vmatpush1.bf16.msra.mxu0 0
    %199 = vmatprep.subr.bf16.mxu0 0
    %200 = vmatpush1.bf16.msra.mxu0 0
    %201 = vmatprep.subr.bf16.mxu0 0
    %202 = vmatpush1.bf16.msra.mxu0 0
    %203 = vmatprep.subr.bf16.mxu0 0
    %204 = vmatpush1.bf16.msra.mxu0 0
    %205 = vmatprep.subr.bf16.mxu0 0
    %206 = vmatpush1.bf16.msra.mxu0 0
    %207 = vmatprep.subr.bf16.mxu0 0
    %208 = vmatpush1.bf16.msra.mxu0 0
    %209 = vmatprep.mubr.bf16.mxu0 0
    %210 = vmatmul.mubr.bf16.gmra.mrb[0].mxu0 %v134
    %v211 = vpop.f32.mrb[0].mxu0
    %v212 = vadd.f32 %v83, %v211
    %v213 = vpop.f32.mrb[0].mxu0
    %v214 = vadd.f32 %v87, %v213
    %v215 = vpop.f32.mrb[0].mxu0
    %v216 = vpop.f32.mrb[0].mxu0
    %217 = vdwg.mxu0
    %v218 = vmax.f32 %v171, 0.0
    %v219 = vmax.f32 %v173, 0.0
    %v220 = vmax.f32 %v212, 0.0
    %v221 = vmax.f32 %v214, 0.0
    %v222 = vpack.c.bf16 %v218, %v218
    %v223 = vpack.c.bf16 %v219, %v219
    %v224 = vpack.c.bf16 %v220, %v220
    %v225 = vpack.c.bf16 %v221, %v221
    %v226 = vld [vmem:[#allocation7] sm:$0xff]
    %v227 = vld [vmem:[#allocation7 + $0x8] sm:$0xff]
    %v228 = vld [vmem:[#allocation7 + $0x10] sm:$0xff]
    %v229 = vld [vmem:[#allocation7 + $0x18] sm:$0xff]
    %v230 = vld [vmem:[#allocation7 + $0x20] sm:$0xff]
    %v231 = vld [vmem:[#allocation7 + $0x28] sm:$0xff]
    %v232 = vld [vmem:[#allocation7 + $0x30] sm:$0xff]
    %v233 = vld [vmem:[#allocation7 + $0x38] sm:$0xff]
    %v234 = vld [vmem:[#allocation7 + $0x40] sm:$0xff]
    %v235 = vld [vmem:[#allocation7 + $0x48] sm:$0xff]
    %v236 = vld [vmem:[#allocation7 + $0x50] sm:$0xff]
    %v237 = vld [vmem:[#allocation7 + $0x58] sm:$0xff]
    %v238 = vld [vmem:[#allocation7 + $0x60] sm:$0xff]
    %v239 = vld [vmem:[#allocation7 + $0x68] sm:$0xff]
    %v240 = vld [vmem:[#allocation7 + $0x70] sm:$0xff]
    %v241 = vld [vmem:[#allocation7 + $0x78] sm:$0xff]
    %v242 = vld [vmem:[#allocation7 + $0x80] sm:$0xff]
    %v243 = vld [vmem:[#allocation7 + $0x88] sm:$0xff]
    %v244 = vld [vmem:[#allocation7 + $0x90] sm:$0xff]
    %v245 = vld [vmem:[#allocation7 + $0x98] sm:$0xff]
    %v246 = vld [vmem:[#allocation7 + $0xa0] sm:$0xff]
    %v247 = vld [vmem:[#allocation7 + $0xa8] sm:$0xff]
    %v248 = vld [vmem:[#allocation7 + $0xb0] sm:$0xff]
    %v249 = vld [vmem:[#allocation7 + $0xb8] sm:$0xff]
    %v250 = vld [vmem:[#allocation7 + $0xc0] sm:$0xff]
    %v251 = vld [vmem:[#allocation7 + $0xc8] sm:$0xff]
    %v252 = vld [vmem:[#allocation7 + $0xd0] sm:$0xff]
    %v253 = vld [vmem:[#allocation7 + $0xd8] sm:$0xff]
    %v254 = vld [vmem:[#allocation7 + $0xe0] sm:$0xff]
    %v255 = vld [vmem:[#allocation7 + $0xe8] sm:$0xff]
    %v256 = vld [vmem:[#allocation7 + $0xf0] sm:$0xff]
    %v257 = vld [vmem:[#allocation7 + $0xf8] sm:$0xff]
    %v258 = vld [vmem:[#allocation7 + $0x100] sm:$0xff]
    %v259 = vld [vmem:[#allocation7 + $0x108] sm:$0xff]
    %v260 = vld [vmem:[#allocation7 + $0x110] sm:$0xff]
    %v261 = vld [vmem:[#allocation7 + $0x118] sm:$0xff]
    %v262 = vld [vmem:[#allocation7 + $0x120] sm:$0xff]
    %v263 = vld [vmem:[#allocation7 + $0x128] sm:$0xff]
    %v264 = vld [vmem:[#allocation7 + $0x130] sm:$0xff]
    %v265 = vld [vmem:[#allocation7 + $0x138] sm:$0xff]
    %v266 = vld [vmem:[#allocation7 + $0x140] sm:$0xff]
    %v267 = vld [vmem:[#allocation7 + $0x148] sm:$0xff]
    %v268 = vld [vmem:[#allocation7 + $0x150] sm:$0xff]
    %v269 = vld [vmem:[#allocation7 + $0x158] sm:$0xff]
    %v270 = vld [vmem:[#allocation7 + $0x160] sm:$0xff]
    %v271 = vld [vmem:[#allocation7 + $0x168] sm:$0xff]
    %v272 = vld [vmem:[#allocation7 + $0x170] sm:$0xff]
    %v273 = vld [vmem:[#allocation7 + $0x178] sm:$0xff]
    %v274 = vld [vmem:[#allocation7 + $0x180] sm:$0xff]
    %v275 = vld [vmem:[#allocation7 + $0x188] sm:$0xff]
    %v276 = vld [vmem:[#allocation7 + $0x190] sm:$0xff]
    %v277 = vld [vmem:[#allocation7 + $0x198] sm:$0xff]
    %v278 = vld [vmem:[#allocation7 + $0x1a0] sm:$0xff]
    %v279 = vld [vmem:[#allocation7 + $0x1a8] sm:$0xff]
    %v280 = vld [vmem:[#allocation7 + $0x1b0] sm:$0xff]
    %v281 = vld [vmem:[#allocation7 + $0x1b8] sm:$0xff]
    %v282 = vld [vmem:[#allocation7 + $0x1c0] sm:$0xff]
    %v283 = vld [vmem:[#allocation7 + $0x1c8] sm:$0xff]
    %v284 = vld [vmem:[#allocation7 + $0x1d0] sm:$0xff]
    %v285 = vld [vmem:[#allocation7 + $0x1d8] sm:$0xff]
    %v286 = vld [vmem:[#allocation7 + $0x1e0] sm:$0xff]
    %v287 = vld [vmem:[#allocation7 + $0x1e8] sm:$0xff]
    %v288 = vld [vmem:[#allocation7 + $0x1f0] sm:$0xff]
    %v289 = vld [vmem:[#allocation7 + $0x1f8] sm:$0xff]
    %v290 = vld [vmem:[#allocation7 + $0x200] sm:$0xff]
    %v291 = vld [vmem:[#allocation7 + $0x208] sm:$0xff]
    %v292 = vld [vmem:[#allocation7 + $0x210] sm:$0xff]
    %v293 = vld [vmem:[#allocation7 + $0x218] sm:$0xff]
    %v294 = vld [vmem:[#allocation7 + $0x220] sm:$0xff]
    %v295 = vld [vmem:[#allocation7 + $0x228] sm:$0xff]
    %v296 = vld [vmem:[#allocation7 + $0x230] sm:$0xff]
    %v297 = vld [vmem:[#allocation7 + $0x238] sm:$0xff]
    %v298 = vld [vmem:[#allocation7 + $0x240] sm:$0xff]
    %v299 = vld [vmem:[#allocation7 + $0x248] sm:$0xff]
    %v300 = vld [vmem:[#allocation7 + $0x250] sm:$0xff]
    %v301 = vld [vmem:[#allocation7 + $0x258] sm:$0xff]
    %v302 = vld [vmem:[#allocation7 + $0x260] sm:$0xff]
    %v303 = vld [vmem:[#allocation7 + $0x268] sm:$0xff]
    %v304 = vld [vmem:[#allocation7 + $0x270] sm:$0xff]
    %v305 = vld [vmem:[#allocation7 + $0x278] sm:$0xff]
    %v306 = vld [vmem:[#allocation7 + $0x280] sm:$0xff]
    %v307 = vld [vmem:[#allocation7 + $0x288] sm:$0xff]
    %v308 = vld [vmem:[#allocation7 + $0x290] sm:$0xff]
    %v309 = vld [vmem:[#allocation7 + $0x298] sm:$0xff]
    %v310 = vld [vmem:[#allocation7 + $0x2a0] sm:$0xff]
    %v311 = vld [vmem:[#allocation7 + $0x2a8] sm:$0xff]
    %v312 = vld [vmem:[#allocation7 + $0x2b0] sm:$0xff]
    %v313 = vld [vmem:[#allocation7 + $0x2b8] sm:$0xff]
    %v314 = vld [vmem:[#allocation7 + $0x2c0] sm:$0xff]
    %v315 = vld [vmem:[#allocation7 + $0x2c8] sm:$0xff]
    %v316 = vld [vmem:[#allocation7 + $0x2d0] sm:$0xff]
    %v317 = vld [vmem:[#allocation7 + $0x2d8] sm:$0xff]
    %v318 = vld [vmem:[#allocation7 + $0x2e0] sm:$0xff]
    %v319 = vld [vmem:[#allocation7 + $0x2e8] sm:$0xff]
    %v320 = vld [vmem:[#allocation7 + $0x2f0] sm:$0xff]
    %v321 = vld [vmem:[#allocation7 + $0x2f8] sm:$0xff]
    %v322 = vld [vmem:[#allocation7 + $0x300] sm:$0xff]
    %v323 = vld [vmem:[#allocation7 + $0x308] sm:$0xff]
    %v324 = vld [vmem:[#allocation7 + $0x310] sm:$0xff]
    %v325 = vld [vmem:[#allocation7 + $0x318] sm:$0xff]
    %v326 = vld [vmem:[#allocation7 + $0x320] sm:$0xff]
    %v327 = vld [vmem:[#allocation7 + $0x328] sm:$0xff]
    %v328 = vld [vmem:[#allocation7 + $0x330] sm:$0xff]
    %v329 = vld [vmem:[#allocation7 + $0x338] sm:$0xff]
    %v330 = vld [vmem:[#allocation7 + $0x340] sm:$0xff]
    %v331 = vld [vmem:[#allocation7 + $0x348] sm:$0xff]
    %v332 = vld [vmem:[#allocation7 + $0x350] sm:$0xff]
    %v333 = vld [vmem:[#allocation7 + $0x358] sm:$0xff]
    %v334 = vld [vmem:[#allocation7 + $0x360] sm:$0xff]
    %v335 = vld [vmem:[#allocation7 + $0x368] sm:$0xff]
    %v336 = vld [vmem:[#allocation7 + $0x370] sm:$0xff]
    %v337 = vld [vmem:[#allocation7 + $0x378] sm:$0xff]
    %v338 = vld [vmem:[#allocation7 + $0x380] sm:$0xff]
    %v339 = vld [vmem:[#allocation7 + $0x388] sm:$0xff]
    %v340 = vld [vmem:[#allocation7 + $0x390] sm:$0xff]
    %v341 = vld [vmem:[#allocation7 + $0x398] sm:$0xff]
    %v342 = vld [vmem:[#allocation7 + $0x3a0] sm:$0xff]
    %v343 = vld [vmem:[#allocation7 + $0x3a8] sm:$0xff]
    %v344 = vld [vmem:[#allocation7 + $0x3b0] sm:$0xff]
    %v345 = vld [vmem:[#allocation7 + $0x3b8] sm:$0xff]
    %v346 = vld [vmem:[#allocation7 + $0x3c0] sm:$0xff]
    %v347 = vld [vmem:[#allocation7 + $0x3c8] sm:$0xff]
    %v348 = vld [vmem:[#allocation7 + $0x3d0] sm:$0xff]
    %v349 = vld [vmem:[#allocation7 + $0x3d8] sm:$0xff]
    %v350 = vld [vmem:[#allocation7 + $0x3e0] sm:$0xff]
    %v351 = vld [vmem:[#allocation7 + $0x3e8] sm:$0xff]
    %v352 = vld [vmem:[#allocation7 + $0x3f0] sm:$0xff]
    %v353 = vld [vmem:[#allocation7 + $0x3f8] sm:$0xff]
    %v354 = vld [vmem:[%s4] sm:$0xf]
    %v356 = vlaneseq
    %v357 = vshrl.u32 %v356, 7
    %v358 = vsub.s32 0, %v357
    %v359 = vrot.slane %v354, %v358
    %v360 = vlaneseq
    %v361 = vshrl.u32 %v360, 7
    %v362 = vsub.s32 1, %v361
    %v363 = vrot.slane %v354, %v362
    %v364 = vlaneseq
    %v365 = vshrl.u32 %v364, 7
    %v366 = vsub.s32 2, %v365
    %v367 = vrot.slane %v354, %v366
    %v368 = vlaneseq
    %v369 = vshrl.u32 %v368, 7
    %v370 = vsub.s32 3, %v369
    %v371 = vrot.slane %v354, %v370
    %v504 = vunpack.c.l.b16 %v226
    %v505 = vunpack.c.h.b16 %v226
    %v506 = vunpack.c.l.b16 %v227
    %v507 = vunpack.c.h.b16 %v227
    %v508 = vunpack.c.l.b16 %v228
    %v509 = vunpack.c.h.b16 %v228
    %v510 = vunpack.c.l.b16 %v229
    %v511 = vunpack.c.h.b16 %v229
    %v512 = vunpack.c.l.b16 %v230
    %v513 = vunpack.c.h.b16 %v230
    %v514 = vunpack.c.l.b16 %v231
    %v515 = vunpack.c.h.b16 %v231
    %v516 = vunpack.c.l.b16 %v232
    %v517 = vunpack.c.h.b16 %v232
    %v518 = vunpack.c.l.b16 %v233
    %v519 = vunpack.c.h.b16 %v233
    %v520 = vunpack.c.l.b16 %v234
    %v521 = vunpack.c.h.b16 %v234
    %v522 = vunpack.c.l.b16 %v235
    %v523 = vunpack.c.h.b16 %v235
    %v524 = vunpack.c.l.b16 %v236
    %v525 = vunpack.c.h.b16 %v236
    %v526 = vunpack.c.l.b16 %v237
    %v527 = vunpack.c.h.b16 %v237
    %v528 = vunpack.c.l.b16 %v238
    %v529 = vunpack.c.h.b16 %v238
    %v530 = vunpack.c.l.b16 %v239
    %v531 = vunpack.c.h.b16 %v239
    %v532 = vunpack.c.l.b16 %v240
    %v533 = vunpack.c.h.b16 %v240
    %v534 = vunpack.c.l.b16 %v241
    %v535 = vunpack.c.h.b16 %v241
    %v536 = vunpack.c.l.b16 %v242
    %v537 = vunpack.c.h.b16 %v242
    %v538 = vunpack.c.l.b16 %v243
    %v539 = vunpack.c.h.b16 %v243
    %v540 = vunpack.c.l.b16 %v244
    %v541 = vunpack.c.h.b16 %v244
    %v542 = vunpack.c.l.b16 %v245
    %v543 = vunpack.c.h.b16 %v245
    %v544 = vunpack.c.l.b16 %v246
    %v545 = vunpack.c.h.b16 %v246
    %v546 = vunpack.c.l.b16 %v247
    %v547 = vunpack.c.h.b16 %v247
    %v548 = vunpack.c.l.b16 %v248
    %v549 = vunpack.c.h.b16 %v248
    %v550 = vunpack.c.l.b16 %v249
    %v551 = vunpack.c.h.b16 %v249
    %v552 = vunpack.c.l.b16 %v250
    %v553 = vunpack.c.h.b16 %v250
    %v554 = vunpack.c.l.b16 %v251
    %v555 = vunpack.c.h.b16 %v251
    %v556 = vunpack.c.l.b16 %v252
    %v557 = vunpack.c.h.b16 %v252
    %v558 = vunpack.c.l.b16 %v253
    %v559 = vunpack.c.h.b16 %v253
    %v560 = vunpack.c.l.b16 %v254
    %v561 = vunpack.c.h.b16 %v254
    %v562 = vunpack.c.l.b16 %v255
    %v563 = vunpack.c.h.b16 %v255
    %v564 = vunpack.c.l.b16 %v256
    %v565 = vunpack.c.h.b16 %v256
    %v566 = vunpack.c.l.b16 %v257
    %v567 = vunpack.c.h.b16 %v257
    %v568 = vunpack.c.l.b16 %v258
    %v569 = vunpack.c.h.b16 %v258
    %v570 = vunpack.c.l.b16 %v259
    %v571 = vunpack.c.h.b16 %v259
    %v572 = vunpack.c.l.b16 %v260
    %v573 = vunpack.c.h.b16 %v260
    %v574 = vunpack.c.l.b16 %v261
    %v575 = vunpack.c.h.b16 %v261
    %v576 = vunpack.c.l.b16 %v262
    %v577 = vunpack.c.h.b16 %v262
    %v578 = vunpack.c.l.b16 %v263
    %v579 = vunpack.c.h.b16 %v263
    %v580 = vunpack.c.l.b16 %v264
    %v581 = vunpack.c.h.b16 %v264
    %v582 = vunpack.c.l.b16 %v265
    %v583 = vunpack.c.h.b16 %v265
    %v584 = vunpack.c.l.b16 %v266
    %v585 = vunpack.c.h.b16 %v266
    %v586 = vunpack.c.l.b16 %v267
    %v587 = vunpack.c.h.b16 %v267
    %v588 = vunpack.c.l.b16 %v268
    %v589 = vunpack.c.h.b16 %v268
    %v590 = vunpack.c.l.b16 %v269
    %v591 = vunpack.c.h.b16 %v269
    %v592 = vunpack.c.l.b16 %v270
    %v593 = vunpack.c.h.b16 %v270
    %v594 = vunpack.c.l.b16 %v271
    %v595 = vunpack.c.h.b16 %v271
    %v596 = vunpack.c.l.b16 %v272
    %v597 = vunpack.c.h.b16 %v272
    %v598 = vunpack.c.l.b16 %v273
    %v599 = vunpack.c.h.b16 %v273
    %v600 = vunpack.c.l.b16 %v274
    %v601 = vunpack.c.h.b16 %v274
    %v602 = vunpack.c.l.b16 %v275
    %v603 = vunpack.c.h.b16 %v275
    %v604 = vunpack.c.l.b16 %v276
    %v605 = vunpack.c.h.b16 %v276
    %v606 = vunpack.c.l.b16 %v277
    %v607 = vunpack.c.h.b16 %v277
    %v608 = vunpack.c.l.b16 %v278
    %v609 = vunpack.c.h.b16 %v278
    %v610 = vunpack.c.l.b16 %v279
    %v611 = vunpack.c.h.b16 %v279
    %v612 = vunpack.c.l.b16 %v280
    %v613 = vunpack.c.h.b16 %v280
    %v614 = vunpack.c.l.b16 %v281
    %v615 = vunpack.c.h.b16 %v281
    %v616 = vunpack.c.l.b16 %v282
    %v617 = vunpack.c.h.b16 %v282
    %v618 = vunpack.c.l.b16 %v283
    %v619 = vunpack.c.h.b16 %v283
    %v620 = vunpack.c.l.b16 %v284
    %v621 = vunpack.c.h.b16 %v284
    %v622 = vunpack.c.l.b16 %v285
    %v623 = vunpack.c.h.b16 %v285
    %v624 = vunpack.c.l.b16 %v286
    %v625 = vunpack.c.h.b16 %v286
    %v626 = vunpack.c.l.b16 %v287
    %v627 = vunpack.c.h.b16 %v287
    %v628 = vunpack.c.l.b16 %v288
    %v629 = vunpack.c.h.b16 %v288
    %v630 = vunpack.c.l.b16 %v289
    %v631 = vunpack.c.h.b16 %v289
    %v632 = vunpack.c.l.b16 %v290
    %v633 = vunpack.c.h.b16 %v290
    %v634 = vunpack.c.l.b16 %v291
    %v635 = vunpack.c.h.b16 %v291
    %v636 = vunpack.c.l.b16 %v292
    %v637 = vunpack.c.h.b16 %v292
    %v638 = vunpack.c.l.b16 %v293
    %v639 = vunpack.c.h.b16 %v293
    %v640 = vunpack.c.l.b16 %v294
    %v641 = vunpack.c.h.b16 %v294
    %v642 = vunpack.c.l.b16 %v295
    %v643 = vunpack.c.h.b16 %v295
    %v644 = vunpack.c.l.b16 %v296
    %v645 = vunpack.c.h.b16 %v296
    %v646 = vunpack.c.l.b16 %v297
    %v647 = vunpack.c.h.b16 %v297
    %v648 = vunpack.c.l.b16 %v298
    %v649 = vunpack.c.h.b16 %v298
    %v650 = vunpack.c.l.b16 %v299
    %v651 = vunpack.c.h.b16 %v299
    %v652 = vunpack.c.l.b16 %v300
    %v653 = vunpack.c.h.b16 %v300
    %v654 = vunpack.c.l.b16 %v301
    %v655 = vunpack.c.h.b16 %v301
    %v656 = vunpack.c.l.b16 %v302
    %v657 = vunpack.c.h.b16 %v302
    %v658 = vunpack.c.l.b16 %v303
    %v659 = vunpack.c.h.b16 %v303
    %v660 = vunpack.c.l.b16 %v304
    %v661 = vunpack.c.h.b16 %v304
    %v662 = vunpack.c.l.b16 %v305
    %v663 = vunpack.c.h.b16 %v305
    %v664 = vunpack.c.l.b16 %v306
    %v665 = vunpack.c.h.b16 %v306
    %v666 = vunpack.c.l.b16 %v307
    %v667 = vunpack.c.h.b16 %v307
    %v668 = vunpack.c.l.b16 %v308
    %v669 = vunpack.c.h.b16 %v308
    %v670 = vunpack.c.l.b16 %v309
    %v671 = vunpack.c.h.b16 %v309
    %v672 = vunpack.c.l.b16 %v310
    %v673 = vunpack.c.h.b16 %v310
    %v674 = vunpack.c.l.b16 %v311
    %v675 = vunpack.c.h.b16 %v311
    %v676 = vunpack.c.l.b16 %v312
    %v677 = vunpack.c.h.b16 %v312
    %v678 = vunpack.c.l.b16 %v313
    %v679 = vunpack.c.h.b16 %v313
    %v680 = vunpack.c.l.b16 %v314
    %v681 = vunpack.c.h.b16 %v314
    %v682 = vunpack.c.l.b16 %v315
    %v683 = vunpack.c.h.b16 %v315
    %v684 = vunpack.c.l.b16 %v316
    %v685 = vunpack.c.h.b16 %v316
    %v686 = vunpack.c.l.b16 %v317
    %v687 = vunpack.c.h.b16 %v317
    %v688 = vunpack.c.l.b16 %v318
    %v689 = vunpack.c.h.b16 %v318
    %v690 = vunpack.c.l.b16 %v319
    %v691 = vunpack.c.h.b16 %v319
    %v692 = vunpack.c.l.b16 %v320
    %v693 = vunpack.c.h.b16 %v320
    %v694 = vunpack.c.l.b16 %v321
    %v695 = vunpack.c.h.b16 %v321
    %v696 = vunpack.c.l.b16 %v322
    %v697 = vunpack.c.h.b16 %v322
    %v698 = vunpack.c.l.b16 %v323
    %v699 = vunpack.c.h.b16 %v323
    %v700 = vunpack.c.l.b16 %v324
    %v701 = vunpack.c.h.b16 %v324
    %v702 = vunpack.c.l.b16 %v325
    %v703 = vunpack.c.h.b16 %v325
    %v704 = vunpack.c.l.b16 %v326
    %v705 = vunpack.c.h.b16 %v326
    %v706 = vunpack.c.l.b16 %v327
    %v707 = vunpack.c.h.b16 %v327
    %v708 = vunpack.c.l.b16 %v328
    %v709 = vunpack.c.h.b16 %v328
    %v710 = vunpack.c.l.b16 %v329
    %v711 = vunpack.c.h.b16 %v329
    %v712 = vunpack.c.l.b16 %v330
    %v713 = vunpack.c.h.b16 %v330
    %v714 = vunpack.c.l.b16 %v331
    %v715 = vunpack.c.h.b16 %v331
    %v716 = vunpack.c.l.b16 %v332
    %v717 = vunpack.c.h.b16 %v332
    %v718 = vunpack.c.l.b16 %v333
    %v719 = vunpack.c.h.b16 %v333
    %v720 = vunpack.c.l.b16 %v334
    %v721 = vunpack.c.h.b16 %v334
    %v722 = vunpack.c.l.b16 %v335
    %v723 = vunpack.c.h.b16 %v335
    %v724 = vunpack.c.l.b16 %v336
    %v725 = vunpack.c.h.b16 %v336
    %v726 = vunpack.c.l.b16 %v337
    %v727 = vunpack.c.h.b16 %v337
    %v728 = vunpack.c.l.b16 %v338
    %v729 = vunpack.c.h.b16 %v338
    %v730 = vunpack.c.l.b16 %v339
    %v731 = vunpack.c.h.b16 %v339
    %v732 = vunpack.c.l.b16 %v340
    %v733 = vunpack.c.h.b16 %v340
    %v734 = vunpack.c.l.b16 %v341
    %v735 = vunpack.c.h.b16 %v341
    %v736 = vunpack.c.l.b16 %v342
    %v737 = vunpack.c.h.b16 %v342
    %v738 = vunpack.c.l.b16 %v343
    %v739 = vunpack.c.h.b16 %v343
    %v740 = vunpack.c.l.b16 %v344
    %v741 = vunpack.c.h.b16 %v344
    %v742 = vunpack.c.l.b16 %v345
    %v743 = vunpack.c.h.b16 %v345
    %v744 = vunpack.c.l.b16 %v346
    %v745 = vunpack.c.h.b16 %v346
    %v746 = vunpack.c.l.b16 %v347
    %v747 = vunpack.c.h.b16 %v347
    %v748 = vunpack.c.l.b16 %v348
    %v749 = vunpack.c.h.b16 %v348
    %v750 = vunpack.c.l.b16 %v349
    %v751 = vunpack.c.h.b16 %v349
    %v752 = vunpack.c.l.b16 %v350
    %v753 = vunpack.c.h.b16 %v350
    %v754 = vunpack.c.l.b16 %v351
    %v755 = vunpack.c.h.b16 %v351
    %v756 = vunpack.c.l.b16 %v352
    %v757 = vunpack.c.h.b16 %v352
    %v758 = vunpack.c.l.b16 %v353
    %v759 = vunpack.c.h.b16 %v353
    %v760 = vpack.c.b16 %v508, %v504
    %v761 = vpack.c.b16 %v509, %v505
    %v762 = vpack.c.b16 %v510, %v506
    %v763 = vpack.c.b16 %v511, %v507
    %v764 = vpack.c.b16 %v516, %v512
    %v765 = vpack.c.b16 %v517, %v513
    %v766 = vpack.c.b16 %v518, %v514
    %v767 = vpack.c.b16 %v519, %v515
    %v768 = vpack.c.b16 %v524, %v520
    %v769 = vpack.c.b16 %v525, %v521
    %v770 = vpack.c.b16 %v526, %v522
    %v771 = vpack.c.b16 %v527, %v523
    %v772 = vpack.c.b16 %v532, %v528
    %v773 = vpack.c.b16 %v533, %v529
    %v774 = vpack.c.b16 %v534, %v530
    %v775 = vpack.c.b16 %v535, %v531
    %v776 = vpack.c.b16 %v540, %v536
    %v777 = vpack.c.b16 %v541, %v537
    %v778 = vpack.c.b16 %v542, %v538
    %v779 = vpack.c.b16 %v543, %v539
    %v780 = vpack.c.b16 %v548, %v544
    %v781 = vpack.c.b16 %v549, %v545
    %v782 = vpack.c.b16 %v550, %v546
    %v783 = vpack.c.b16 %v551, %v547
    %v784 = vpack.c.b16 %v556, %v552
    %v785 = vpack.c.b16 %v557, %v553
    %v786 = vpack.c.b16 %v558, %v554
    %v787 = vpack.c.b16 %v559, %v555
    %v788 = vpack.c.b16 %v564, %v560
    %v789 = vpack.c.b16 %v565, %v561
    %v790 = vpack.c.b16 %v566, %v562
    %v791 = vpack.c.b16 %v567, %v563
    %v792 = vpack.c.b16 %v572, %v568
    %v793 = vpack.c.b16 %v573, %v569
    %v794 = vpack.c.b16 %v574, %v570
    %v795 = vpack.c.b16 %v575, %v571
    %v796 = vpack.c.b16 %v580, %v576
    %v797 = vpack.c.b16 %v581, %v577
    %v798 = vpack.c.b16 %v582, %v578
    %v799 = vpack.c.b16 %v583, %v579
    %v800 = vpack.c.b16 %v588, %v584
    %v801 = vpack.c.b16 %v589, %v585
    %v802 = vpack.c.b16 %v590, %v586
    %v803 = vpack.c.b16 %v591, %v587
    %v804 = vpack.c.b16 %v596, %v592
    %v805 = vpack.c.b16 %v597, %v593
    %v806 = vpack.c.b16 %v598, %v594
    %v807 = vpack.c.b16 %v599, %v595
    %v808 = vpack.c.b16 %v604, %v600
    %v809 = vpack.c.b16 %v605, %v601
    %v810 = vpack.c.b16 %v606, %v602
    %v811 = vpack.c.b16 %v607, %v603
    %v812 = vpack.c.b16 %v612, %v608
    %v813 = vpack.c.b16 %v613, %v609
    %v814 = vpack.c.b16 %v614, %v610
    %v815 = vpack.c.b16 %v615, %v611
    %v816 = vpack.c.b16 %v620, %v616
    %v817 = vpack.c.b16 %v621, %v617
    %v818 = vpack.c.b16 %v622, %v618
    %v819 = vpack.c.b16 %v623, %v619
    %v820 = vpack.c.b16 %v628, %v624
    %v821 = vpack.c.b16 %v629, %v625
    %v822 = vpack.c.b16 %v630, %v626
    %v823 = vpack.c.b16 %v631, %v627
    %v824 = vpack.c.b16 %v636, %v632
    %v825 = vpack.c.b16 %v637, %v633
    %v826 = vpack.c.b16 %v638, %v634
    %v827 = vpack.c.b16 %v639, %v635
    %v828 = vpack.c.b16 %v644, %v640
    %v829 = vpack.c.b16 %v645, %v641
    %v830 = vpack.c.b16 %v646, %v642
    %v831 = vpack.c.b16 %v647, %v643
    %v832 = vpack.c.b16 %v652, %v648
    %v833 = vpack.c.b16 %v653, %v649
    %v834 = vpack.c.b16 %v654, %v650
    %v835 = vpack.c.b16 %v655, %v651
    %v836 = vpack.c.b16 %v660, %v656
    %v837 = vpack.c.b16 %v661, %v657
    %v838 = vpack.c.b16 %v662, %v658
    %v839 = vpack.c.b16 %v663, %v659
    %v840 = vpack.c.b16 %v668, %v664
    %v841 = vpack.c.b16 %v669, %v665
    %v842 = vpack.c.b16 %v670, %v666
    %v843 = vpack.c.b16 %v671, %v667
    %v844 = vpack.c.b16 %v676, %v672
    %v845 = vpack.c.b16 %v677, %v673
    %v846 = vpack.c.b16 %v678, %v674
    %v847 = vpack.c.b16 %v679, %v675
    %v848 = vpack.c.b16 %v684, %v680
    %v849 = vpack.c.b16 %v685, %v681
    %v850 = vpack.c.b16 %v686, %v682
    %v851 = vpack.c.b16 %v687, %v683
    %v852 = vpack.c.b16 %v692, %v688
    %v853 = vpack.c.b16 %v693, %v689
    %v854 = vpack.c.b16 %v694, %v690
    %v855 = vpack.c.b16 %v695, %v691
    %v856 = vpack.c.b16 %v700, %v696
    %v857 = vpack.c.b16 %v701, %v697
    %v858 = vpack.c.b16 %v702, %v698
    %v859 = vpack.c.b16 %v703, %v699
    %v860 = vpack.c.b16 %v708, %v704
    %v861 = vpack.c.b16 %v709, %v705
    %v862 = vpack.c.b16 %v710, %v706
    %v863 = vpack.c.b16 %v711, %v707
    %v864 = vpack.c.b16 %v716, %v712
    %v865 = vpack.c.b16 %v717, %v713
    %v866 = vpack.c.b16 %v718, %v714
    %v867 = vpack.c.b16 %v719, %v715
    %v868 = vpack.c.b16 %v724, %v720
    %v869 = vpack.c.b16 %v725, %v721
    %v870 = vpack.c.b16 %v726, %v722
    %v871 = vpack.c.b16 %v727, %v723
    %v872 = vpack.c.b16 %v732, %v728
    %v873 = vpack.c.b16 %v733, %v729
    %v874 = vpack.c.b16 %v734, %v730
    %v875 = vpack.c.b16 %v735, %v731
    %v876 = vpack.c.b16 %v740, %v736
    %v877 = vpack.c.b16 %v741, %v737
    %v878 = vpack.c.b16 %v742, %v738
    %v879 = vpack.c.b16 %v743, %v739
    %v880 = vpack.c.b16 %v748, %v744
    %v881 = vpack.c.b16 %v749, %v745
    %v882 = vpack.c.b16 %v750, %v746
    %v883 = vpack.c.b16 %v751, %v747
    %v884 = vpack.c.b16 %v756, %v752
    %v885 = vpack.c.b16 %v757, %v753
    %v886 = vpack.c.b16 %v758, %v754
    %v887 = vpack.c.b16 %v759, %v755
    %1016 = vmatprep.subr.bf16.mxu0 %v761
    %1017 = vmatpush1.bf16.msra.mxu0 %v760
    %1018 = vmatprep.subr.bf16.mxu0 %v765
    %1019 = vmatpush1.bf16.msra.mxu0 %v764
    %1020 = vmatprep.subr.bf16.mxu0 %v769
    %1021 = vmatpush1.bf16.msra.mxu0 %v768
    %1022 = vmatprep.subr.bf16.mxu0 %v773
    %1023 = vmatpush1.bf16.msra.mxu0 %v772
    %1024 = vmatprep.subr.bf16.mxu0 %v777
    %1025 = vmatpush1.bf16.msra.mxu0 %v776
    %1026 = vmatprep.subr.bf16.mxu0 %v781
    %1027 = vmatpush1.bf16.msra.mxu0 %v780
    %1028 = vmatprep.subr.bf16.mxu0 %v785
    %1029 = vmatpush1.bf16.msra.mxu0 %v784
    %1030 = vmatprep.subr.bf16.mxu0 %v789
    %1031 = vmatpush1.bf16.msra.mxu0 %v788
    %1032 = vmatprep.subr.bf16.mxu0 %v793
    %1033 = vmatpush1.bf16.msra.mxu0 %v792
    %1034 = vmatprep.subr.bf16.mxu0 %v797
    %1035 = vmatpush1.bf16.msra.mxu0 %v796
    %1036 = vmatprep.subr.bf16.mxu0 %v801
    %1037 = vmatpush1.bf16.msra.mxu0 %v800
    %1038 = vmatprep.subr.bf16.mxu0 %v805
    %1039 = vmatpush1.bf16.msra.mxu0 %v804
    %1040 = vmatprep.subr.bf16.mxu0 %v809
    %1041 = vmatpush1.bf16.msra.mxu0 %v808
    %1042 = vmatprep.subr.bf16.mxu0 %v813
    %1043 = vmatpush1.bf16.msra.mxu0 %v812
    %1044 = vmatprep.subr.bf16.mxu0 %v817
    %1045 = vmatpush1.bf16.msra.mxu0 %v816
    %1046 = vmatprep.subr.bf16.mxu0 %v821
    %1047 = vmatpush1.bf16.msra.mxu0 %v820
    %1048 = vmatprep.mubr.bf16.mxu0 %v223
    %1049 = vmatmul.mubr.bf16.gmra.mrb[0].mxu0 %v222
    %v1050 = vpop.f32.mrb[0].mxu0
    %v1051 = vadd.f32 %v359, %v1050
    %v1052 = vpop.f32.mrb[0].mxu0
    %v1053 = vadd.f32 %v363, %v1052
    %v1054 = vpop.f32.mrb[0].mxu0
    %v1055 = vpop.f32.mrb[0].mxu0
    %1056 = vdwg.mxu0
    %1057 = vmatprep.subr.bf16.mxu0 %v825
    %1058 = vmatpush1.bf16.msra.mxu0 %v824
    %1059 = vmatprep.subr.bf16.mxu0 %v829
    %1060 = vmatpush1.bf16.msra.mxu0 %v828
    %1061 = vmatprep.subr.bf16.mxu0 %v833
    %1062 = vmatpush1.bf16.msra.mxu0 %v832
    %1063 = vmatprep.subr.bf16.mxu0 %v837
    %1064 = vmatpush1.bf16.msra.mxu0 %v836
    %1065 = vmatprep.subr.bf16.mxu0 %v841
    %1066 = vmatpush1.bf16.msra.mxu0 %v840
    %1067 = vmatprep.subr.bf16.mxu0 %v845
    %1068 = vmatpush1.bf16.msra.mxu0 %v844
    %1069 = vmatprep.subr.bf16.mxu0 %v849
    %1070 = vmatpush1.bf16.msra.mxu0 %v848
    %1071 = vmatprep.subr.bf16.mxu0 %v853
    %1072 = vmatpush1.bf16.msra.mxu0 %v852
    %1073 = vmatprep.subr.bf16.mxu0 %v857
    %1074 = vmatpush1.bf16.msra.mxu0 %v856
    %1075 = vmatprep.subr.bf16.mxu0 %v861
    %1076 = vmatpush1.bf16.msra.mxu0 %v860
    %1077 = vmatprep.subr.bf16.mxu0 %v865
    %1078 = vmatpush1.bf16.msra.mxu0 %v864
    %1079 = vmatprep.subr.bf16.mxu0 %v869
    %1080 = vmatpush1.bf16.msra.mxu0 %v868
    %1081 = vmatprep.subr.bf16.mxu0 %v873
    %1082 = vmatpush1.bf16.msra.mxu0 %v872
    %1083 = vmatprep.subr.bf16.mxu0 %v877
    %1084 = vmatpush1.bf16.msra.mxu0 %v876
    %1085 = vmatprep.subr.bf16.mxu0 %v881
    %1086 = vmatpush1.bf16.msra.mxu0 %v880
    %1087 = vmatprep.subr.bf16.mxu0 %v885
    %1088 = vmatpush1.bf16.msra.mxu0 %v884
    %1089 = vmatprep.mubr.bf16.mxu0 %v225
    %1090 = vmatmul.mubr.bf16.gmra.mrb[0].mxu0 %v224
    %v1091 = vpop.f32.mrb[0].mxu0
    %v1092 = vadd.f32 %v1051, %v1091
    %v1093 = vpop.f32.mrb[0].mxu0
    %v1094 = vadd.f32 %v1053, %v1093
    %v1095 = vpop.f32.mrb[0].mxu0
    %v1096 = vpop.f32.mrb[0].mxu0
    %1097 = vdwg.mxu0
    %1098 = vmatprep.subr.bf16.mxu0 %v763
    %1099 = vmatpush1.bf16.msra.mxu0 %v762
    %1100 = vmatprep.subr.bf16.mxu0 %v767
    %1101 = vmatpush1.bf16.msra.mxu0 %v766
    %1102 = vmatprep.subr.bf16.mxu0 %v771
    %1103 = vmatpush1.bf16.msra.mxu0 %v770
    %1104 = vmatprep.subr.bf16.mxu0 %v775
    %1105 = vmatpush1.bf16.msra.mxu0 %v774
    %1106 = vmatprep.subr.bf16.mxu0 %v779
    %1107 = vmatpush1.bf16.msra.mxu0 %v778
    %1108 = vmatprep.subr.bf16.mxu0 %v783
    %1109 = vmatpush1.bf16.msra.mxu0 %v782
    %1110 = vmatprep.subr.bf16.mxu0 %v787
    %1111 = vmatpush1.bf16.msra.mxu0 %v786
    %1112 = vmatprep.subr.bf16.mxu0 %v791
    %1113 = vmatpush1.bf16.msra.mxu0 %v790
    %1114 = vmatprep.subr.bf16.mxu0 %v795
    %1115 = vmatpush1.bf16.msra.mxu0 %v794
    %1116 = vmatprep.subr.bf16.mxu0 %v799
    %1117 = vmatpush1.bf16.msra.mxu0 %v798
    %1118 = vmatprep.subr.bf16.mxu0 %v803
    %1119 = vmatpush1.bf16.msra.mxu0 %v802
    %1120 = vmatprep.subr.bf16.mxu0 %v807
    %1121 = vmatpush1.bf16.msra.mxu0 %v806
    %1122 = vmatprep.subr.bf16.mxu0 %v811
    %1123 = vmatpush1.bf16.msra.mxu0 %v810
    %1124 = vmatprep.subr.bf16.mxu0 %v815
    %1125 = vmatpush1.bf16.msra.mxu0 %v814
    %1126 = vmatprep.subr.bf16.mxu0 %v819
    %1127 = vmatpush1.bf16.msra.mxu0 %v818
    %1128 = vmatprep.subr.bf16.mxu0 %v823
    %1129 = vmatpush1.bf16.msra.mxu0 %v822
    %1130 = vmatprep.mubr.bf16.mxu0 %v223
    %1131 = vmatmul.mubr.bf16.gmra.mrb[0].mxu0 %v222
    %v1132 = vpop.f32.mrb[0].mxu0
    %v1133 = vadd.f32 %v367, %v1132
    %v1134 = vpop.f32.mrb[0].mxu0
    %v1135 = vadd.f32 %v371, %v1134
    %v1136 = vpop.f32.mrb[0].mxu0
    %v1137 = vpop.f32.mrb[0].mxu0
    %1138 = vdwg.mxu0
    %1139 = vmatprep.subr.bf16.mxu0 %v827
    %1140 = vmatpush1.bf16.msra.mxu0 %v826
    %1141 = vmatprep.subr.bf16.mxu0 %v831
    %1142 = vmatpush1.bf16.msra.mxu0 %v830
    %1143 = vmatprep.subr.bf16.mxu0 %v835
    %1144 = vmatpush1.bf16.msra.mxu0 %v834
    %1145 = vmatprep.subr.bf16.mxu0 %v839
    %1146 = vmatpush1.bf16.msra.mxu0 %v838
    %1147 = vmatprep.subr.bf16.mxu0 %v843
    %1148 = vmatpush1.bf16.msra.mxu0 %v842
    %1149 = vmatprep.subr.bf16.mxu0 %v847
    %1150 = vmatpush1.bf16.msra.mxu0 %v846
    %1151 = vmatprep.subr.bf16.mxu0 %v851
    %1152 = vmatpush1.bf16.msra.mxu0 %v850
    %1153 = vmatprep.subr.bf16.mxu0 %v855
    %1154 = vmatpush1.bf16.msra.mxu0 %v854
    %1155 = vmatprep.subr.bf16.mxu0 %v859
    %1156 = vmatpush1.bf16.msra.mxu0 %v858
    %1157 = vmatprep.subr.bf16.mxu0 %v863
    %1158 = vmatpush1.bf16.msra.mxu0 %v862
    %1159 = vmatprep.subr.bf16.mxu0 %v867
    %1160 = vmatpush1.bf16.msra.mxu0 %v866
    %1161 = vmatprep.subr.bf16.mxu0 %v871
    %1162 = vmatpush1.bf16.msra.mxu0 %v870
    %1163 = vmatprep.subr.bf16.mxu0 %v875
    %1164 = vmatpush1.bf16.msra.mxu0 %v874
    %1165 = vmatprep.subr.bf16.mxu0 %v879
    %1166 = vmatpush1.bf16.msra.mxu0 %v878
    %1167 = vmatprep.subr.bf16.mxu0 %v883
    %1168 = vmatpush1.bf16.msra.mxu0 %v882
    %1169 = vmatprep.subr.bf16.mxu0 %v887
    %1170 = vmatpush1.bf16.msra.mxu0 %v886
    %1171 = vmatprep.mubr.bf16.mxu0 %v225
    %1172 = vmatmul.mubr.bf16.gmra.mrb[0].mxu0 %v224
    %v1173 = vpop.f32.mrb[0].mxu0
    %v1174 = vadd.f32 %v1133, %v1173
    %v1175 = vpop.f32.mrb[0].mxu0
    %v1176 = vadd.f32 %v1135, %v1175
    %v1177 = vpop.f32.mrb[0].mxu0
    %v1178 = vpop.f32.mrb[0].mxu0
    %1179 = vdwg.mxu0
    %1180 = vst [vmem:[#allocation8] sm:$0xff] %v1092
    %1181 = vst [vmem:[#allocation8 + $0x8] sm:$0xff] %v1094
    %1182 = vst [vmem:[#allocation8 + $0x10] sm:$0xff] %v1174
    %1183 = vst [vmem:[#allocation8 + $0x18] sm:$0xff] %v1176
    // Predicated region
    $region34: #{tpu_custom_call.1} parent=1 // pred_check
      _
    $region35: #{tpu_custom_call.1} parent=1 // pred_check_branch
      %1185 = sbr.rel (0) target = $region37
    $region36: #{tpu_custom_call.1} parent=1 // pred_region
      %s1187 = ssub.s32 512, 512
      %1188 = vsyncadd [#allocation4], %s1187
      %s1190 = sshll.u32 [#allocation8], 4
      %s1191 = int_to_ptr.vmem [resolvable:$true] %s1190
      %1193 = dma.vmem_to_hbm [thread:$0]  %s1191, 512, %s5, [#allocation4]
    $region37: #{tpu_custom_call.1} parent=1 // pred_fallthru
      _
    // Predicated region
    $region38: #{tpu_custom_call.1} parent=1 // pred_check
      _
    $region39: #{tpu_custom_call.1} parent=1 // pred_check_branch
      %1195 = sbr.rel (0) target = $region41
    $region40: #{tpu_custom_call.1} parent=1 // pred_region
      %1196 = dma.done [#allocation4], 512
    $region41: #{tpu_custom_call.1} parent=1 // pred_fallthru
      _
    %1197 = vsyncpa [#allocation3], 1
    %1198 = vsyncpa [#allocation6], 1
    %1199 = vsyncpa [#allocation4], 1

</llo_original>
